<compile_context>
chip_gen: v6e
topology: v6e:2x2x1
jax: 0.10.0
libtpu: 0.0.40
codegen_flags: <defaults>
</compile_context>

<pallas_src>
import numpy as np
import jax
import jax.numpy as jnp
from jax.experimental import pallas as pl
from jax.experimental.pallas import tpu as pltpu

EPS = 1e-12


def _round_up(x, m):
    return (x + m - 1) // m * m


# ---------------------------------------------------------------------------
# Kernel 1: tiled per-channel sum / sum-of-squares (single pass over the data).
# x_ref: (TR, Cin) row tile; stat_ref: (2, Cin) resident accumulator
#   row 0 = sum(x), row 1 = sum(x*x)
# ---------------------------------------------------------------------------
def bn_stats_kernel(x_ref, stat_ref):
    @pl.when(pl.program_id(0) == 0)
    def _():
        stat_ref[...] = jnp.zeros_like(stat_ref)

    x = x_ref[...]
    s = jnp.sum(x, axis=0, keepdims=True)
    sq = jnp.sum(x * x, axis=0, keepdims=True)
    stat_ref[...] += jnp.concatenate([s, sq], axis=0)


def conv_block_2d(x, gamma, beta, w, b, kernel_size, dilation):
    """x: (N, Cin, H, W) float32 -> (N, Cout, H, W) float32."""
    N, Cin, H, W = x.shape
    Kh, Kw = kernel_size
    Dh, Dw = dilation
    Cout = w.shape[0]
    HW = H * W

    pad_h = (Kh - 1) * Dh
    pad_w = (Kw - 1) * Dw
    pad_u = pad_h // 2
    pad_l = pad_w // 2
    Hp = H + pad_h
    Wp = W + pad_w

    # NCHW -> NHWC: channels on the lane (minor) axis for the GEMM formulation.
    x_nhwc = jnp.transpose(x, (0, 2, 3, 1))
    M = N * HW
    x2d = x_nhwc.reshape(M, Cin)

    # ---- Pass 1: BN batch statistics (tiled, accumulated in a resident block) ----
    TR = min(512, _round_up(M, 8))
    Mp = _round_up(M, TR)
    # Zero row padding does not change sum / sum-of-squares; divide by the true M below.
    x2d_s = x2d if Mp == M else jnp.pad(x2d, ((0, Mp - M), (0, 0)))
    stats = pl.pallas_call(
        bn_stats_kernel,
        out_shape=jax.ShapeDtypeStruct((2, Cin), jnp.float32),
        grid=(Mp // TR,),
        in_specs=[pl.BlockSpec((TR, Cin), lambda i: (i, 0))],
        out_specs=pl.BlockSpec((2, Cin), lambda i: (0, 0)),
        compiler_params=pltpu.CompilerParams(dimension_semantics=("arbitrary",)),
    )(x2d_s)

    mean = stats[0] / M
    var = jnp.maximum(stats[1] / M - mean * mean, 0.0)  # biased variance
    inv = jax.lax.rsqrt(var + EPS)
    scale2d = (gamma * inv).reshape(1, Cin)
    shift2d = (beta - mean * gamma * inv).reshape(1, Cin)

    # ---- weights: (Cout, Cin, Kh, Kw) -> (Kh*Kw, Cin, Cout_pad), lane-dense Cout ----
    Cout_pad = _round_up(Cout, 128)
    w_taps = jnp.transpose(w, (2, 3, 1, 0)).reshape(Kh * Kw, Cin, Cout)
    w_taps = jnp.pad(w_taps, ((0, 0), (0, 0), (0, Cout_pad - Cout)))
    b_pad = jnp.pad(b, (0, Cout_pad - Cout)).reshape(1, Cout_pad)

    # ---- Pass 2: fused BN(scale/shift) + ReLU + zero-pad + conv-as-GEMM ----
    def fused_kernel(x_ref, scale_ref, shift_ref, w_ref, b_ref, o_ref, ypad_ref):
        # Normalize + ReLU the (H, W, Cin) image and place it inside a zeroed
        # (Hp, Wp, Cin) VMEM scratch -> zero padding applied *after* BN/ReLU,
        # exactly like F.pad in the module.
        ypad_ref[...] = jnp.zeros_like(ypad_ref)
        y = jnp.maximum(x_ref[0] * scale_ref[...] + shift_ref[...], 0.0)
        ypad_ref[pad_u:pad_u + H, pad_l:pad_l + W, :] = y

        # Convolution: Kh*Kw shifted-window GEMMs accumulated in f32.
        # The im2col patches only ever live in VMEM (static window slices of the scratch).
        acc = jnp.zeros((HW, Cout_pad), jnp.float32)
        for kh in range(Kh):
            for kw in range(Kw):
                win = ypad_ref[kh * Dh:kh * Dh + H, kw * Dw:kw * Dw + W, :]
                acc = acc + jnp.dot(win.reshape(HW, Cin), w_ref[kh * Kw + kw],
                                    preferred_element_type=jnp.float32)
        o_ref[0] = acc + b_ref[...]

    out = pl.pallas_call(
        fused_kernel,
        out_shape=jax.ShapeDtypeStruct((N, HW, Cout_pad), jnp.float32),
        grid=(N,),
        in_specs=[
            pl.BlockSpec((1, H, W, Cin), lambda n: (n, 0, 0, 0)),        # one image / step
            pl.BlockSpec((1, Cin), lambda n: (0, 0)),                    # BN scale (resident)
            pl.BlockSpec((1, Cin), lambda n: (0, 0)),                    # BN shift (resident)
            pl.BlockSpec((Kh * Kw, Cin, Cout_pad), lambda n: (0, 0, 0)), # weights (resident)
            pl.BlockSpec((1, Cout_pad), lambda n: (0, 0)),               # bias (resident)
        ],
        out_specs=pl.BlockSpec((1, HW, Cout_pad), lambda n: (n, 0, 0)),
        scratch_shapes=[pltpu.VMEM((Hp, Wp, Cin), jnp.float32)],
        compiler_params=pltpu.CompilerParams(dimension_semantics=("parallel",)),
    )(x_nhwc, scale2d, shift2d, w_taps, b_pad)

    out = out[:, :, :Cout].reshape(N, H, W, Cout)
    return jnp.transpose(out, (0, 3, 1, 2))


# ---------------------------------------------------------------------------
# Pure-JAX reference for verification.
# ---------------------------------------------------------------------------
def reference(x, gamma, beta, w, b, kernel_size, dilation):
    Kh, Kw = kernel_size
    Dh, Dw = dilation
    mean = jnp.mean(x, axis=(0, 2, 3), keepdims=True)
    var = jnp.mean((x - mean) ** 2, axis=(0, 2, 3), keepdims=True)
    xn = (x - mean) * jax.lax.rsqrt(var + EPS)
    xn = xn * gamma.reshape(1, -1, 1, 1) + beta.reshape(1, -1, 1, 1)
    xn = jnp.maximum(xn, 0.0)
    ph, pw = (Kh - 1) * Dh, (Kw - 1) * Dw
    xp = jnp.pad(xn, ((0, 0), (0, 0), (ph // 2, ph - ph // 2), (pw // 2, pw - pw // 2)))
    out = jax.lax.conv_general_dilated(
        xp, w, window_strides=(1, 1), padding="VALID",
        rhs_dilation=(Dh, Dw),
        dimension_numbers=("NCHW", "OIHW", "NCHW"),
    )
    return out + b.reshape(1, -1, 1, 1)


if __name__ == "__main__":
    # Small shapes consistent with the module: (batch, in_channels, H, W)
    N, Cin, Cout, H, W = 2, 4, 8, 16, 16
    kernel_size = (3, 3)
    dilation = (1, 1)

    key = jax.random.PRNGKey(0)
    kx, kw, kb = jax.random.split(key, 3)
    x = jax.random.normal(kx, (N, Cin, H, W), dtype=jnp.float32)

    # Deterministic parameter init (BN: gamma=1, beta=0; conv: random weight/bias).
    gamma = jnp.ones((Cin,), dtype=jnp.float32)
    beta = jnp.zeros((Cin,), dtype=jnp.float32)
    fan_in = Cin * kernel_size[0] * kernel_size[1]
    bound = 1.0 / np.sqrt(fan_in)
    w = jax.random.uniform(kw, (Cout, Cin, *kernel_size), jnp.float32, -bound, bound)
    b = jax.random.uniform(kb, (Cout,), jnp.float32, -bound, bound)

    out = conv_block_2d(x, gamma, beta, w, b, kernel_size, dilation)
    out = jax.block_until_ready(out)

    ref = jax.block_until_ready(reference(x, gamma, beta, w, b, kernel_size, dilation))
    assert out.shape == (N, Cout, H, W), out.shape
    np.testing.assert_allclose(np.asarray(out), np.asarray(ref), rtol=1e-4, atol=1e-4)

    print("KERNEL_OK")
</pallas_src>

<mosaic_0001>
module attributes {stable_mosaic.version = 11 : i64} {
  func.func @bn_stats_kernel(%arg0: i32, %arg1: memref<512x4xf32, #tpu.memory_space<vmem>>, %arg2: memref<2x4xf32, #tpu.memory_space<vmem>>) attributes {dimension_semantics = [#tpu.dimension_semantics<arbitrary>], iteration_bounds = array<i64: 1>, scalar_prefetch = 0 : i64, scratch_operands = 0 : i64, tpu.core_type = #tpu.core_type<tc>, window_params = [{transform_indices = @transform_0, window_bounds = array<i64: 512, 4>}, {pipeline_mode = #tpu.pipeline_mode<synchronous>, transform_indices = @transform_1, window_bounds = array<i64: 2, 4>}]} {
    %c0_i32 = arith.constant 0 : i32
    %0 = arith.cmpi eq, %arg0, %c0_i32 : i32
    %1 = arith.extui %0 : i1 to i32
    %c0_i32_0 = arith.constant 0 : i32
    %2 = arith.cmpi ne, %1, %c0_i32_0 : i32
    scf.if %2 {
      %cst_7 = arith.constant 0.000000e+00 : f32
      %13 = vector.broadcast %cst_7 : f32 to vector<2x4xf32>
      %c0_8 = arith.constant 0 : index
      %c0_9 = arith.constant 0 : index
      %14 = vector.load %arg2[%c0_8, %c0_9] : memref<2x4xf32, #tpu.memory_space<vmem>>, vector<2x4xf32>
      tpu.vector_store %arg2[%c0_8, %c0_9], %13 {strides = array<i32>} : memref<2x4xf32, #tpu.memory_space<vmem>>, vector<2x4xf32>,
    } else {
    }
    %c0 = arith.constant 0 : index
    %c0_1 = arith.constant 0 : index
    %3 = vector.load %arg1[%c0, %c0_1] : memref<512x4xf32, #tpu.memory_space<vmem>>, vector<512x4xf32>
    %cst = arith.constant dense<0.000000e+00> : vector<4xf32>
    %4 = vector.multi_reduction <add>, %3, %cst [0] : vector<512x4xf32> to vector<4xf32>
    %5 = vector.shape_cast %4 : vector<4xf32> to vector<1x4xf32>
    %6 = arith.mulf %3, %3 : vector<512x4xf32>
    %cst_2 = arith.constant dense<0.000000e+00> : vector<4xf32>
    %7 = vector.multi_reduction <add>, %6, %cst_2 [0] : vector<512x4xf32> to vector<4xf32>
    %8 = vector.shape_cast %7 : vector<4xf32> to vector<1x4xf32>
    %c0_3 = arith.constant 0 : index
    %c0_4 = arith.constant 0 : index
    %9 = vector.load %arg2[%c0_3, %c0_4] : memref<2x4xf32, #tpu.memory_space<vmem>>, vector<2x4xf32>
    %10 = tpu.concatenate %5, %8 in 0 : vector<1x4xf32>, vector<1x4xf32> -> vector<2x4xf32>
    %11 = arith.addf %9, %10 : vector<2x4xf32>
    %c0_5 = arith.constant 0 : index
    %c0_6 = arith.constant 0 : index
    %12 = vector.load %arg2[%c0_5, %c0_6] : memref<2x4xf32, #tpu.memory_space<vmem>>, vector<2x4xf32>
    tpu.vector_store %arg2[%c0_5, %c0_6], %11 {strides = array<i32>} : memref<2x4xf32, #tpu.memory_space<vmem>>, vector<2x4xf32>,
    return
  }
  func.func @transform_0(%arg0: i32) -> (i32, i32) {
    %c0_i32 = arith.constant 0 : i32
    %c0_i32_0 = arith.constant 0 : i32
    return %arg0, %c0_i32 : i32, i32
  }
  func.func @transform_1(%arg0: i32) -> (i32, i32) {
    %c0_i32 = arith.constant 0 : i32
    %c0_i32_0 = arith.constant 0 : i32
    %c0_i32_1 = arith.constant 0 : i32
    return %c0_i32, %c0_i32_0 : i32, i32
  }
}

</mosaic_0001>

<llo_original>
// kernel: tpu_custom_call.1
$region0: #{tpu_custom_call.1}
  #allocation0 [shape = 'u32[]', space=smem, size = 0x4, offset = 0x4, fixed_abs, tag = 'smem constant byte address 0x4 - core index']
  #allocation1 [shape = 'u32[144,128]{1,0:T(1,128)}', space=vmem, size = 0x12000, scoped, tag = 'internal scratch']
  %s0 = inlined_call_operand.vmem [shape: f32[512,4], index: 0, kind: input, shape index: {}]
  %s1 = inlined_call_operand.hbm [shape: f32[2,4], index: 1, kind: output, shape index: {}]
  %s2 = sld [smem:[#allocation0]]
  $region18: #{tpu_custom_call.1} parent=0
    _
  %s4 = ssub.s32 1, %s2
  %s5 = scalar_select 0, %s4, %s2
  $region1: #{tpu_custom_call.1} parent=0
    #allocation2 [shape = 'u8[1024]{0}', space=vmem, size = 0x400, scoped, tag = 'output window, operand 0, single buffered']
    #allocation3 [shape = 's32[1]{0}', space=sflag, size = 0x4, scoped, tag = 'scoped memory for tpu_custom_call.1']
    %6 = vsyncpa [#allocation3], 0
    // Predicated region
    $region2: #{tpu_custom_call.1} parent=1 // pred_check
      _
    $region3: #{tpu_custom_call.1} parent=1 // pred_check_branch
      %8 = sbr.rel (0) target = $region5
    $region4: #{tpu_custom_call.1} parent=1 // pred_region
      _
    $region5: #{tpu_custom_call.1} parent=1 // pred_fallthru
      _
    %p9 = scmp.eq.s32.totalorder 0, 0
    // Predicated region
    $region6: #{tpu_custom_call.1} parent=1 // pred_check
      %p10 = pneg %p9
    $region7: #{tpu_custom_call.1} parent=1 // pred_check_branch
      %12 = sbr.rel (%p10) target = $region9
    $region8: #{tpu_custom_call.1} parent=1 // pred_region
      %vm13 = vcmask 25600
      %14 = vst.msk [vmem:[#allocation2] sm:$0x3] %vm13, 0.0
    $region9: #{tpu_custom_call.1} parent=1 // pred_fallthru
      _
    %v15 = vld [vmem:[%s0] sm:$0xff]
    %v16 = vld [vmem:[%s0 + $0x8] sm:$0xff]
    %v17 = vld [vmem:[%s0 + $0x10] sm:$0xff]
    %v18 = vld [vmem:[%s0 + $0x18] sm:$0xff]
    %v19 = vld [vmem:[%s0 + $0x20] sm:$0xff]
    %v20 = vld [vmem:[%s0 + $0x28] sm:$0xff]
    %v21 = vld [vmem:[%s0 + $0x30] sm:$0xff]
    %v22 = vld [vmem:[%s0 + $0x38] sm:$0xff]
    %v23 = vld [vmem:[%s0 + $0x40] sm:$0xff]
    %v24 = vld [vmem:[%s0 + $0x48] sm:$0xff]
    %v25 = vld [vmem:[%s0 + $0x50] sm:$0xff]
    %v26 = vld [vmem:[%s0 + $0x58] sm:$0xff]
    %v27 = vld [vmem:[%s0 + $0x60] sm:$0xff]
    %v28 = vld [vmem:[%s0 + $0x68] sm:$0xff]
    %v29 = vld [vmem:[%s0 + $0x70] sm:$0xff]
    %v30 = vld [vmem:[%s0 + $0x78] sm:$0xff]
    %v31 = vld [vmem:[%s0 + $0x80] sm:$0xff]
    %v32 = vld [vmem:[%s0 + $0x88] sm:$0xff]
    %v33 = vld [vmem:[%s0 + $0x90] sm:$0xff]
    %v34 = vld [vmem:[%s0 + $0x98] sm:$0xff]
    %v35 = vld [vmem:[%s0 + $0xa0] sm:$0xff]
    %v36 = vld [vmem:[%s0 + $0xa8] sm:$0xff]
    %v37 = vld [vmem:[%s0 + $0xb0] sm:$0xff]
    %v38 = vld [vmem:[%s0 + $0xb8] sm:$0xff]
    %v39 = vld [vmem:[%s0 + $0xc0] sm:$0xff]
    %v40 = vld [vmem:[%s0 + $0xc8] sm:$0xff]
    %v41 = vld [vmem:[%s0 + $0xd0] sm:$0xff]
    %v42 = vld [vmem:[%s0 + $0xd8] sm:$0xff]
    %v43 = vld [vmem:[%s0 + $0xe0] sm:$0xff]
    %v44 = vld [vmem:[%s0 + $0xe8] sm:$0xff]
    %v45 = vld [vmem:[%s0 + $0xf0] sm:$0xff]
    %v46 = vld [vmem:[%s0 + $0xf8] sm:$0xff]
    %v47 = vld [vmem:[%s0 + $0x100] sm:$0xff]
    %v48 = vld [vmem:[%s0 + $0x108] sm:$0xff]
    %v49 = vld [vmem:[%s0 + $0x110] sm:$0xff]
    %v50 = vld [vmem:[%s0 + $0x118] sm:$0xff]
    %v51 = vld [vmem:[%s0 + $0x120] sm:$0xff]
    %v52 = vld [vmem:[%s0 + $0x128] sm:$0xff]
    %v53 = vld [vmem:[%s0 + $0x130] sm:$0xff]
    %v54 = vld [vmem:[%s0 + $0x138] sm:$0xff]
    %v55 = vld [vmem:[%s0 + $0x140] sm:$0xff]
    %v56 = vld [vmem:[%s0 + $0x148] sm:$0xff]
    %v57 = vld [vmem:[%s0 + $0x150] sm:$0xff]
    %v58 = vld [vmem:[%s0 + $0x158] sm:$0xff]
    %v59 = vld [vmem:[%s0 + $0x160] sm:$0xff]
    %v60 = vld [vmem:[%s0 + $0x168] sm:$0xff]
    %v61 = vld [vmem:[%s0 + $0x170] sm:$0xff]
    %v62 = vld [vmem:[%s0 + $0x178] sm:$0xff]
    %v63 = vld [vmem:[%s0 + $0x180] sm:$0xff]
    %v64 = vld [vmem:[%s0 + $0x188] sm:$0xff]
    %v65 = vld [vmem:[%s0 + $0x190] sm:$0xff]
    %v66 = vld [vmem:[%s0 + $0x198] sm:$0xff]
    %v67 = vld [vmem:[%s0 + $0x1a0] sm:$0xff]
    %v68 = vld [vmem:[%s0 + $0x1a8] sm:$0xff]
    %v69 = vld [vmem:[%s0 + $0x1b0] sm:$0xff]
    %v70 = vld [vmem:[%s0 + $0x1b8] sm:$0xff]
    %v71 = vld [vmem:[%s0 + $0x1c0] sm:$0xff]
    %v72 = vld [vmem:[%s0 + $0x1c8] sm:$0xff]
    %v73 = vld [vmem:[%s0 + $0x1d0] sm:$0xff]
    %v74 = vld [vmem:[%s0 + $0x1d8] sm:$0xff]
    %v75 = vld [vmem:[%s0 + $0x1e0] sm:$0xff]
    %v76 = vld [vmem:[%s0 + $0x1e8] sm:$0xff]
    %v77 = vld [vmem:[%s0 + $0x1f0] sm:$0xff]
    %v78 = vld [vmem:[%s0 + $0x1f8] sm:$0xff]
    %vm79 = vcmask 31744
    %v80 = vsel %vm79, %v15, 0.0
    %v81 = vsel %vm79, %v16, 0.0
    %v82 = vadd.f32 %v80, %v81
    %v83 = vsel %vm79, %v17, 0.0
    %v84 = vadd.f32 %v82, %v83
    %v85 = vsel %vm79, %v18, 0.0
    %v86 = vadd.f32 %v84, %v85
    %v87 = vsel %vm79, %v19, 0.0
    %v88 = vadd.f32 %v86, %v87
    %v89 = vsel %vm79, %v20, 0.0
    %v90 = vadd.f32 %v88, %v89
    %v91 = vsel %vm79, %v21, 0.0
    %v92 = vadd.f32 %v90, %v91
    %v93 = vsel %vm79, %v22, 0.0
    %v94 = vadd.f32 %v92, %v93
    %v95 = vsel %vm79, %v23, 0.0
    %v96 = vadd.f32 %v94, %v95
    %v97 = vsel %vm79, %v24, 0.0
    %v98 = vadd.f32 %v96, %v97
    %v99 = vsel %vm79, %v25, 0.0
    %v100 = vadd.f32 %v98, %v99
    %v101 = vsel %vm79, %v26, 0.0
    %v102 = vadd.f32 %v100, %v101
    %v103 = vsel %vm79, %v27, 0.0
    %v104 = vadd.f32 %v102, %v103
    %v105 = vsel %vm79, %v28, 0.0
    %v106 = vadd.f32 %v104, %v105
    %v107 = vsel %vm79, %v29, 0.0
    %v108 = vadd.f32 %v106, %v107
    %v109 = vsel %vm79, %v30, 0.0
    %v110 = vadd.f32 %v108, %v109
    %v111 = vsel %vm79, %v31, 0.0
    %v112 = vadd.f32 %v110, %v111
    %v113 = vsel %vm79, %v32, 0.0
    %v114 = vadd.f32 %v112, %v113
    %v115 = vsel %vm79, %v33, 0.0
    %v116 = vadd.f32 %v114, %v115
    %v117 = vsel %vm79, %v34, 0.0
    %v118 = vadd.f32 %v116, %v117
    %v119 = vsel %vm79, %v35, 0.0
    %v120 = vadd.f32 %v118, %v119
    %v121 = vsel %vm79, %v36, 0.0
    %v122 = vadd.f32 %v120, %v121
    %v123 = vsel %vm79, %v37, 0.0
    %v124 = vadd.f32 %v122, %v123
    %v125 = vsel %vm79, %v38, 0.0
    %v126 = vadd.f32 %v124, %v125
    %v127 = vsel %vm79, %v39, 0.0
    %v128 = vadd.f32 %v126, %v127
    %v129 = vsel %vm79, %v40, 0.0
    %v130 = vadd.f32 %v128, %v129
    %v131 = vsel %vm79, %v41, 0.0
    %v132 = vadd.f32 %v130, %v131
    %v133 = vsel %vm79, %v42, 0.0
    %v134 = vadd.f32 %v132, %v133
    %v135 = vsel %vm79, %v43, 0.0
    %v136 = vadd.f32 %v134, %v135
    %v137 = vsel %vm79, %v44, 0.0
    %v138 = vadd.f32 %v136, %v137
    %v139 = vsel %vm79, %v45, 0.0
    %v140 = vadd.f32 %v138, %v139
    %v141 = vsel %vm79, %v46, 0.0
    %v142 = vadd.f32 %v140, %v141
    %v143 = vsel %vm79, %v47, 0.0
    %v144 = vadd.f32 %v142, %v143
    %v145 = vsel %vm79, %v48, 0.0
    %v146 = vadd.f32 %v144, %v145
    %v147 = vsel %vm79, %v49, 0.0
    %v148 = vadd.f32 %v146, %v147
    %v149 = vsel %vm79, %v50, 0.0
    %v150 = vadd.f32 %v148, %v149
    %v151 = vsel %vm79, %v51, 0.0
    %v152 = vadd.f32 %v150, %v151
    %v153 = vsel %vm79, %v52, 0.0
    %v154 = vadd.f32 %v152, %v153
    %v155 = vsel %vm79, %v53, 0.0
    %v156 = vadd.f32 %v154, %v155
    %v157 = vsel %vm79, %v54, 0.0
    %v158 = vadd.f32 %v156, %v157
    %v159 = vsel %vm79, %v55, 0.0
    %v160 = vadd.f32 %v158, %v159
    %v161 = vsel %vm79, %v56, 0.0
    %v162 = vadd.f32 %v160, %v161
    %v163 = vsel %vm79, %v57, 0.0
    %v164 = vadd.f32 %v162, %v163
    %v165 = vsel %vm79, %v58, 0.0
    %v166 = vadd.f32 %v164, %v165
    %v167 = vsel %vm79, %v59, 0.0
    %v168 = vadd.f32 %v166, %v167
    %v169 = vsel %vm79, %v60, 0.0
    %v170 = vadd.f32 %v168, %v169
    %v171 = vsel %vm79, %v61, 0.0
    %v172 = vadd.f32 %v170, %v171
    %v173 = vsel %vm79, %v62, 0.0
    %v174 = vadd.f32 %v172, %v173
    %v175 = vsel %vm79, %v63, 0.0
    %v176 = vadd.f32 %v174, %v175
    %v177 = vsel %vm79, %v64, 0.0
    %v178 = vadd.f32 %v176, %v177
    %v179 = vsel %vm79, %v65, 0.0
    %v180 = vadd.f32 %v178, %v179
    %v181 = vsel %vm79, %v66, 0.0
    %v182 = vadd.f32 %v180, %v181
    %v183 = vsel %vm79, %v67, 0.0
    %v184 = vadd.f32 %v182, %v183
    %v185 = vsel %vm79, %v68, 0.0
    %v186 = vadd.f32 %v184, %v185
    %v187 = vsel %vm79, %v69, 0.0
    %v188 = vadd.f32 %v186, %v187
    %v189 = vsel %vm79, %v70, 0.0
    %v190 = vadd.f32 %v188, %v189
    %v191 = vsel %vm79, %v71, 0.0
    %v192 = vadd.f32 %v190, %v191
    %v193 = vsel %vm79, %v72, 0.0
    %v194 = vadd.f32 %v192, %v193
    %v195 = vsel %vm79, %v73, 0.0
    %v196 = vadd.f32 %v194, %v195
    %v197 = vsel %vm79, %v74, 0.0
    %v198 = vadd.f32 %v196, %v197
    %v199 = vsel %vm79, %v75, 0.0
    %v200 = vadd.f32 %v198, %v199
    %v201 = vsel %vm79, %v76, 0.0
    %v202 = vadd.f32 %v200, %v201
    %v203 = vsel %vm79, %v77, 0.0
    %v204 = vadd.f32 %v202, %v203
    %v205 = vsel %vm79, %v78, 0.0
    %v206 = vadd.f32 %v204, %v205
    %v207 = vrot.slane %v206, 4
    %v208 = vadd.f32 %v206, %v207
    %v209 = vrot.slane %v208, 2
    %v210 = vadd.f32 %v208, %v209
    %v211 = vrot.slane %v210, 1
    %v212 = vadd.f32 %v210, %v211
    %v213 = vmul.f32 %v15, %v15
    %v214 = vmul.f32 %v16, %v16
    %v215 = vmul.f32 %v17, %v17
    %v216 = vmul.f32 %v18, %v18
    %v217 = vmul.f32 %v19, %v19
    %v218 = vmul.f32 %v20, %v20
    %v219 = vmul.f32 %v21, %v21
    %v220 = vmul.f32 %v22, %v22
    %v221 = vmul.f32 %v23, %v23
    %v222 = vmul.f32 %v24, %v24
    %v223 = vmul.f32 %v25, %v25
    %v224 = vmul.f32 %v26, %v26
    %v225 = vmul.f32 %v27, %v27
    %v226 = vmul.f32 %v28, %v28
    %v227 = vmul.f32 %v29, %v29
    %v228 = vmul.f32 %v30, %v30
    %v229 = vmul.f32 %v31, %v31
    %v230 = vmul.f32 %v32, %v32
    %v231 = vmul.f32 %v33, %v33
    %v232 = vmul.f32 %v34, %v34
    %v233 = vmul.f32 %v35, %v35
    %v234 = vmul.f32 %v36, %v36
    %v235 = vmul.f32 %v37, %v37
    %v236 = vmul.f32 %v38, %v38
    %v237 = vmul.f32 %v39, %v39
    %v238 = vmul.f32 %v40, %v40
    %v239 = vmul.f32 %v41, %v41
    %v240 = vmul.f32 %v42, %v42
    %v241 = vmul.f32 %v43, %v43
    %v242 = vmul.f32 %v44, %v44
    %v243 = vmul.f32 %v45, %v45
    %v244 = vmul.f32 %v46, %v46
    %v245 = vmul.f32 %v47, %v47
    %v246 = vmul.f32 %v48, %v48
    %v247 = vmul.f32 %v49, %v49
    %v248 = vmul.f32 %v50, %v50
    %v249 = vmul.f32 %v51, %v51
    %v250 = vmul.f32 %v52, %v52
    %v251 = vmul.f32 %v53, %v53
    %v252 = vmul.f32 %v54, %v54
    %v253 = vmul.f32 %v55, %v55
    %v254 = vmul.f32 %v56, %v56
    %v255 = vmul.f32 %v57, %v57
    %v256 = vmul.f32 %v58, %v58
    %v257 = vmul.f32 %v59, %v59
    %v258 = vmul.f32 %v60, %v60
    %v259 = vmul.f32 %v61, %v61
    %v260 = vmul.f32 %v62, %v62
    %v261 = vmul.f32 %v63, %v63
    %v262 = vmul.f32 %v64, %v64
    %v263 = vmul.f32 %v65, %v65
    %v264 = vmul.f32 %v66, %v66
    %v265 = vmul.f32 %v67, %v67
    %v266 = vmul.f32 %v68, %v68
    %v267 = vmul.f32 %v69, %v69
    %v268 = vmul.f32 %v70, %v70
    %v269 = vmul.f32 %v71, %v71
    %v270 = vmul.f32 %v72, %v72
    %v271 = vmul.f32 %v73, %v73
    %v272 = vmul.f32 %v74, %v74
    %v273 = vmul.f32 %v75, %v75
    %v274 = vmul.f32 %v76, %v76
    %v275 = vmul.f32 %v77, %v77
    %v276 = vmul.f32 %v78, %v78
    %v277 = vsel %vm79, %v213, 0.0
    %v278 = vsel %vm79, %v214, 0.0
    %v279 = vadd.f32 %v277, %v278
    %v280 = vsel %vm79, %v215, 0.0
    %v281 = vadd.f32 %v279, %v280
    %v282 = vsel %vm79, %v216, 0.0
    %v283 = vadd.f32 %v281, %v282
    %v284 = vsel %vm79, %v217, 0.0
    %v285 = vadd.f32 %v283, %v284
    %v286 = vsel %vm79, %v218, 0.0
    %v287 = vadd.f32 %v285, %v286
    %v288 = vsel %vm79, %v219, 0.0
    %v289 = vadd.f32 %v287, %v288
    %v290 = vsel %vm79, %v220, 0.0
    %v291 = vadd.f32 %v289, %v290
    %v292 = vsel %vm79, %v221, 0.0
    %v293 = vadd.f32 %v291, %v292
    %v294 = vsel %vm79, %v222, 0.0
    %v295 = vadd.f32 %v293, %v294
    %v296 = vsel %vm79, %v223, 0.0
    %v297 = vadd.f32 %v295, %v296
    %v298 = vsel %vm79, %v224, 0.0
    %v299 = vadd.f32 %v297, %v298
    %v300 = vsel %vm79, %v225, 0.0
    %v301 = vadd.f32 %v299, %v300
    %v302 = vsel %vm79, %v226, 0.0
    %v303 = vadd.f32 %v301, %v302
    %v304 = vsel %vm79, %v227, 0.0
    %v305 = vadd.f32 %v303, %v304
    %v306 = vsel %vm79, %v228, 0.0
    %v307 = vadd.f32 %v305, %v306
    %v308 = vsel %vm79, %v229, 0.0
    %v309 = vadd.f32 %v307, %v308
    %v310 = vsel %vm79, %v230, 0.0
    %v311 = vadd.f32 %v309, %v310
    %v312 = vsel %vm79, %v231, 0.0
    %v313 = vadd.f32 %v311, %v312
    %v314 = vsel %vm79, %v232, 0.0
    %v315 = vadd.f32 %v313, %v314
    %v316 = vsel %vm79, %v233, 0.0
    %v317 = vadd.f32 %v315, %v316
    %v318 = vsel %vm79, %v234, 0.0
    %v319 = vadd.f32 %v317, %v318
    %v320 = vsel %vm79, %v235, 0.0
    %v321 = vadd.f32 %v319, %v320
    %v322 = vsel %vm79, %v236, 0.0
    %v323 = vadd.f32 %v321, %v322
    %v324 = vsel %vm79, %v237, 0.0
    %v325 = vadd.f32 %v323, %v324
    %v326 = vsel %vm79, %v238, 0.0
    %v327 = vadd.f32 %v325, %v326
    %v328 = vsel %vm79, %v239, 0.0
    %v329 = vadd.f32 %v327, %v328
    %v330 = vsel %vm79, %v240, 0.0
    %v331 = vadd.f32 %v329, %v330
    %v332 = vsel %vm79, %v241, 0.0
    %v333 = vadd.f32 %v331, %v332
    %v334 = vsel %vm79, %v242, 0.0
    %v335 = vadd.f32 %v333, %v334
    %v336 = vsel %vm79, %v243, 0.0
    %v337 = vadd.f32 %v335, %v336
    %v338 = vsel %vm79, %v244, 0.0
    %v339 = vadd.f32 %v337, %v338
    %v340 = vsel %vm79, %v245, 0.0
    %v341 = vadd.f32 %v339, %v340
    %v342 = vsel %vm79, %v246, 0.0
    %v343 = vadd.f32 %v341, %v342
    %v344 = vsel %vm79, %v247, 0.0
    %v345 = vadd.f32 %v343, %v344
    %v346 = vsel %vm79, %v248, 0.0
    %v347 = vadd.f32 %v345, %v346
    %v348 = vsel %vm79, %v249, 0.0
    %v349 = vadd.f32 %v347, %v348
    %v350 = vsel %vm79, %v250, 0.0
    %v351 = vadd.f32 %v349, %v350
    %v352 = vsel %vm79, %v251, 0.0
    %v353 = vadd.f32 %v351, %v352
    %v354 = vsel %vm79, %v252, 0.0
    %v355 = vadd.f32 %v353, %v354
    %v356 = vsel %vm79, %v253, 0.0
    %v357 = vadd.f32 %v355, %v356
    %v358 = vsel %vm79, %v254, 0.0
    %v359 = vadd.f32 %v357, %v358
    %v360 = vsel %vm79, %v255, 0.0
    %v361 = vadd.f32 %v359, %v360
    %v362 = vsel %vm79, %v256, 0.0
    %v363 = vadd.f32 %v361, %v362
    %v364 = vsel %vm79, %v257, 0.0
    %v365 = vadd.f32 %v363, %v364
    %v366 = vsel %vm79, %v258, 0.0
    %v367 = vadd.f32 %v365, %v366
    %v368 = vsel %vm79, %v259, 0.0
    %v369 = vadd.f32 %v367, %v368
    %v370 = vsel %vm79, %v260, 0.0
    %v371 = vadd.f32 %v369, %v370
    %v372 = vsel %vm79, %v261, 0.0
    %v373 = vadd.f32 %v371, %v372
    %v374 = vsel %vm79, %v262, 0.0
    %v375 = vadd.f32 %v373, %v374
    %v376 = vsel %vm79, %v263, 0.0
    %v377 = vadd.f32 %v375, %v376
    %v378 = vsel %vm79, %v264, 0.0
    %v379 = vadd.f32 %v377, %v378
    %v380 = vsel %vm79, %v265, 0.0
    %v381 = vadd.f32 %v379, %v380
    %v382 = vsel %vm79, %v266, 0.0
    %v383 = vadd.f32 %v381, %v382
    %v384 = vsel %vm79, %v267, 0.0
    %v385 = vadd.f32 %v383, %v384
    %v386 = vsel %vm79, %v268, 0.0
    %v387 = vadd.f32 %v385, %v386
    %v388 = vsel %vm79, %v269, 0.0
    %v389 = vadd.f32 %v387, %v388
    %v390 = vsel %vm79, %v270, 0.0
    %v391 = vadd.f32 %v389, %v390
    %v392 = vsel %vm79, %v271, 0.0
    %v393 = vadd.f32 %v391, %v392
    %v394 = vsel %vm79, %v272, 0.0
    %v395 = vadd.f32 %v393, %v394
    %v396 = vsel %vm79, %v273, 0.0
    %v397 = vadd.f32 %v395, %v396
    %v398 = vsel %vm79, %v274, 0.0
    %v399 = vadd.f32 %v397, %v398
    %v400 = vsel %vm79, %v275, 0.0
    %v401 = vadd.f32 %v399, %v400
    %v402 = vsel %vm79, %v276, 0.0
    %v403 = vadd.f32 %v401, %v402
    %v404 = vrot.slane %v403, 4
    %v405 = vadd.f32 %v403, %v404
    %v406 = vrot.slane %v405, 2
    %v407 = vadd.f32 %v405, %v406
    %v408 = vrot.slane %v407, 1
    %v409 = vadd.f32 %v407, %v408
    %v410 = vld [vmem:[#allocation2] sm:$0x3]
    %vm411 = vcmask 1040384
    %v412 = vsel %vm411, %v212, %v409
    %v413 = vadd.f32 %v410, %v412
    %vm414 = vcmask 25600
    %415 = vst.msk [vmem:[#allocation2] sm:$0x3] %vm414, %v413
    // Predicated region
    $region10: #{tpu_custom_call.1} parent=1 // pred_check
      _
    $region11: #{tpu_custom_call.1} parent=1 // pred_check_branch
      %417 = sbr.rel (0) target = $region13
    $region12: #{tpu_custom_call.1} parent=1 // pred_region
      %s419 = ssub.s32 32, 32
      %420 = vsyncadd [#allocation3], %s419
      %s422 = sshll.u32 [#allocation2], 4
      %s423 = int_to_ptr.vmem [resolvable:$true] %s422
      %425 = dma.vmem_to_hbm [thread:$0]  %s423, 32, %s1, [#allocation3]
    $region13: #{tpu_custom_call.1} parent=1 // pred_fallthru
      _
    // Predicated region
    $region14: #{tpu_custom_call.1} parent=1 // pred_check
      _
    $region15: #{tpu_custom_call.1} parent=1 // pred_check_branch
      %427 = sbr.rel (0) target = $region17
    $region16: #{tpu_custom_call.1} parent=1 // pred_region
      %428 = dma.done [#allocation3], 32
    $region17: #{tpu_custom_call.1} parent=1 // pred_fallthru
      _
    %429 = vsyncpa [#allocation3], 1

</llo_original>
